<compile_context>
chip_gen: v7x
topology: tpu7x:2x2x1
jax: 0.10.0
libtpu: 0.0.40
codegen_flags: <defaults>
</compile_context>

<pallas_src>
import jax
import jax.numpy as jnp
from jax.experimental import pallas as pl
from jax.experimental.pallas import tpu as pltpu

LANE = 128      # vreg lane width (fast, last dim)
SUBLANE = 8     # f32 sublane count (second-to-last dim)
MAX_TB = 128    # batch row-tile cap: bounds padding waste, enables megacore


def _round_up(x, m):
    return (x + m - 1) // m * m


def _const_spec(shape):
    """BlockSpec for a grid-invariant (VMEM-resident) operand, single-buffered."""
    index_map = lambda i: (0,) * len(shape)
    try:
        return pl.BlockSpec(shape, index_map, pipeline_mode=pl.Buffered(1))
    except Exception:                     # older API without pipeline_mode
        return pl.BlockSpec(shape, index_map)


# ----------------------------------------------------------------------------
# kernel: fused fc1 -> ReLU -> fc2 on one row-tile of CLS tokens
# ----------------------------------------------------------------------------
def _cls_head_kernel(x_ref, w1_ref, b1_ref, w2_ref, b2_ref, o_ref):
    # x_ref : (TB, E)    CLS rows, compute dtype (bf16 or f32)
    # w1_ref: (E, Ep)    fc1 weight, (in, out) layout, compute dtype
    # b1_ref: (1, Ep)    fc1 bias, f32
    # w2_ref: (Ep, NCp)  fc2 weight, (in, out) layout, compute dtype
    # b2_ref: (1, NCp)   fc2 bias, f32
    # o_ref : (TB, NCp)  f32 logits (lane-dense, unmasked stores)
    h = jnp.dot(x_ref[...], w1_ref[...], preferred_element_type=jnp.float32)
    h = jnp.maximum(h + b1_ref[...], 0.0)                # bias + ReLU in f32
    # TODO(synk): nn.Dropout is train-time stochastic; identity at inference.
    o = jnp.dot(h.astype(w2_ref.dtype), w2_ref[...],
                preferred_element_type=jnp.float32)
    o_ref[...] = (o + b2_ref[...]).astype(o_ref.dtype)


# ----------------------------------------------------------------------------
# one-time parameter layout prep (hoisted out of the forward hot path)
# ----------------------------------------------------------------------------
def prepare_params(w1, b1, w2, b2, compute_dtype=jnp.bfloat16):
    """Transpose PyTorch (out, in) weights to (in, out), lane-pad the *output*
    dims to multiples of 128 (unmasked MXU pushes / vector stores) and cast
    weights to `compute_dtype` (bf16 default; jnp.float32 for exact parity).
    Biases stay f32 (added to the f32 MXU accumulator).  Call once; reuse."""
    E = int(w1.shape[1])
    NC = int(w2.shape[0])
    Ep = _round_up(E, LANE)
    NCp = _round_up(NC, LANE)

    w1_p = jnp.zeros((E, Ep), compute_dtype).at[:, :E].set(
        w1.T.astype(compute_dtype))
    b1_p = jnp.zeros((1, Ep), jnp.float32).at[0, :E].set(b1.astype(jnp.float32))
    w2_p = jnp.zeros((Ep, NCp), compute_dtype).at[:E, :NC].set(
        w2.T.astype(compute_dtype))
    b2_p = jnp.zeros((1, NCp), jnp.float32).at[0, :NC].set(b2.astype(jnp.float32))
    return {"w1": w1_p, "b1": b1_p, "w2": w2_p, "b2": b2_p, "num_classes": NC}


# ----------------------------------------------------------------------------
# forward wrapper
# ----------------------------------------------------------------------------
def classification_forward(x, w1_p, b1_p, w2_p, b2_p, num_classes):
    """Pallas forward of `Classfication`: y = fc2(relu(fc1(x[:, 0]))).

    x       : (B, S, E) float32 token sequence
    w*_p/b*_p: prepared params from prepare_params (padded / transposed / cast)
    returns (B, num_classes) float32 logits
    """
    B, S, E = x.shape
    Ep = w1_p.shape[1]
    NCp = w2_p.shape[1]
    compute_dtype = w1_p.dtype
    itemsize = jnp.dtype(compute_dtype).itemsize

    # CLS token only: B*E elements read; the (B,S,E) tensor is never copied.
    x_cls = x[:, 0, :].astype(compute_dtype)

    # Batch tiling: full-extent block for small B (no padding, exempt from the
    # 8-sublane rule); 128-row tiles otherwise (waste < 128 rows, >=2 grid
    # steps so "parallel" shards rows across v7x's two TensorCores).
    if B <= MAX_TB:
        TB, Bp = B, B
    else:
        TB = MAX_TB
        Bp = _round_up(B, TB)
        x_cls = jnp.pad(x_cls, ((0, Bp - B), (0, 0)))
    grid = (Bp // TB,)

    # --- VMEM budget: single-buffered resident weights + double-buffered row
    # tiles + f32 ReLU intermediate, capped by the generation's real capacity.
    try:
        vmem_cap = int(pltpu.get_tpu_info().vmem_capacity_bytes)
    except Exception:
        vmem_cap = 64 << 20                       # v7x floor: safe everywhere
    weight_bytes = itemsize * (E * Ep + Ep * NCp)
    bias_bytes = 4 * (Ep + NCp)
    tile_bytes = 2 * itemsize * TB * E + 2 * 4 * TB * NCp
    interm_bytes = 4 * TB * Ep + 4 * TB * NCp     # f32 h and pre-store logits
    need = weight_bytes + bias_bytes + tile_bytes + interm_bytes
    if weight_bytes + bias_bytes > int(0.7 * vmem_cap):
        # TODO(synk): add a K-tiled (second grid axis) variant for heads whose
        # weights cannot stay VMEM-resident; bf16 params (default) avoid this
        # for any realistic ViT head.
        raise ValueError(
            f"head weights ({weight_bytes >> 20} MiB) do not fit in VMEM "
            f"({vmem_cap >> 20} MiB); use bf16 params or tile fc1's output dim.")
    vmem_limit = int(min(max(2 * need, 32 << 20), int(0.9 * vmem_cap)))

    cost = pl.CostEstimate(
        flops=2 * Bp * E * Ep + 2 * Bp * Ep * NCp,
        transcendentals=0,
        bytes_accessed=(itemsize * (Bp * E + E * Ep + Ep * NCp)
                        + 4 * (Ep + NCp) + 4 * Bp * NCp))

    out_p = pl.pallas_call(
        _cls_head_kernel,
        grid=grid,
        out_shape=jax.ShapeDtypeStruct((Bp, NCp), jnp.float32),
        in_specs=[
            pl.BlockSpec((TB, E), lambda i: (i, 0)),   # CLS rows (pipelined)
            _const_spec((E, Ep)),                      # fc1 W (resident, 1-buf)
            _const_spec((1, Ep)),                      # fc1 b
            _const_spec((Ep, NCp)),                    # fc2 W (resident, 1-buf)
            _const_spec((1, NCp)),                     # fc2 b
        ],
        out_specs=pl.BlockSpec((TB, NCp), lambda i: (i, 0)),
        compiler_params=pltpu.CompilerParams(
            dimension_semantics=("parallel",),
            vmem_limit_bytes=vmem_limit),
        cost_estimate=cost,
    )(x_cls, w1_p, b1_p, w2_p, b2_p)

    return out_p[:B, :num_classes]


# ----------------------------------------------------------------------------
# deterministic parameter construction (mirrors nn.Linear default init)
# ----------------------------------------------------------------------------
def init_params(key, embedding_dim, num_classes):
    E, NC = embedding_dim, num_classes
    k1, k2, k3, k4 = jax.random.split(key, 4)
    bound = 1.0 / jnp.sqrt(jnp.float32(E))
    return {
        "w1": jax.random.uniform(k1, (E, E), jnp.float32, -bound, bound),
        "b1": jax.random.uniform(k2, (E,), jnp.float32, -bound, bound),
        "w2": jax.random.uniform(k3, (NC, E), jnp.float32, -bound, bound),
        "b2": jax.random.uniform(k4, (NC,), jnp.float32, -bound, bound),
    }


# ----------------------------------------------------------------------------
if __name__ == "__main__":
    B, S, E, NC = 2, 8, 32, 10          # small shapes consistent with forward
    DROPOUT = 0.0                       # nn.Dropout -> identity at inference

    root = jax.random.PRNGKey(0)
    pkey, xkey = jax.random.split(root)
    raw = init_params(pkey, E, NC)
    x = jax.random.normal(xkey, (B, S, E), dtype=jnp.float32)

    # pure-JAX references (same semantics as the PyTorch module in eval mode)
    x0 = x[:, 0]
    ref_f32 = jnp.maximum(x0 @ raw["w1"].T + raw["b1"], 0.0) @ raw["w2"].T + raw["b2"]

    h_bf = jnp.dot(x0.astype(jnp.bfloat16), raw["w1"].T.astype(jnp.bfloat16),
                   preferred_element_type=jnp.float32) + raw["b1"]
    h_bf = jnp.maximum(h_bf, 0.0)
    ref_bf16 = jnp.dot(h_bf.astype(jnp.bfloat16), raw["w2"].T.astype(jnp.bfloat16),
                       preferred_element_type=jnp.float32) + raw["b2"]

    fwd = jax.jit(classification_forward, static_argnames=("num_classes",))

    # f32 path: exact parity with the module
    p32 = prepare_params(raw["w1"], raw["b1"], raw["w2"], raw["b2"],
                         compute_dtype=jnp.float32)
    out32 = jax.block_until_ready(
        fwd(x, p32["w1"], p32["b1"], p32["w2"], p32["b2"],
            num_classes=p32["num_classes"]))
    assert out32.shape == (B, NC), out32.shape
    assert bool(jnp.all(jnp.isfinite(out32)))
    assert bool(jnp.allclose(out32, ref_f32, atol=1e-5, rtol=1e-5)), \
        float(jnp.max(jnp.abs(out32 - ref_f32)))

    # bf16 path (default, halves weight-DMA bytes): match the bf16 reference
    pbf = prepare_params(raw["w1"], raw["b1"], raw["w2"], raw["b2"])
    outbf = jax.block_until_ready(
        fwd(x, pbf["w1"], pbf["b1"], pbf["w2"], pbf["b2"],
            num_classes=pbf["num_classes"]))
    assert outbf.shape == (B, NC), outbf.shape
    assert bool(jnp.all(jnp.isfinite(outbf)))
    assert bool(jnp.allclose(outbf, ref_bf16, atol=1e-3, rtol=1e-3)), \
        float(jnp.max(jnp.abs(outbf - ref_bf16)))

    print("KERNEL_OK")
</pallas_src>

<mosaic_0001>
module attributes {stable_mosaic.version = 11 : i64} {
  func.func @_cls_head_kernel(%arg0: i32, %arg1: memref<2x32xf32, #tpu.memory_space<vmem>>, %arg2: memref<32x128xf32, #tpu.memory_space<vmem>>, %arg3: memref<1x128xf32, #tpu.memory_space<vmem>>, %arg4: memref<128x128xf32, #tpu.memory_space<vmem>>, %arg5: memref<1x128xf32, #tpu.memory_space<vmem>>, %arg6: memref<2x128xf32, #tpu.memory_space<vmem>>) attributes {dimension_semantics = [#tpu.dimension_semantics<parallel>], iteration_bounds = array<i64: 1>, scalar_prefetch = 0 : i64, scratch_operands = 0 : i64, tpu.core_type = #tpu.core_type<tc>, window_params = [{transform_indices = @transform_0, window_bounds = array<i64: 2, 32>}, {pipeline_mode = #tpu.pipeline_mode<synchronous>, transform_indices = @transform_1, window_bounds = array<i64: 32, 128>}, {pipeline_mode = #tpu.pipeline_mode<synchronous>, transform_indices = @transform_2, window_bounds = array<i64: 1, 128>}, {pipeline_mode = #tpu.pipeline_mode<synchronous>, transform_indices = @transform_3, window_bounds = array<i64: 128, 128>}, {pipeline_mode = #tpu.pipeline_mode<synchronous>, transform_indices = @transform_4, window_bounds = array<i64: 1, 128>}, {transform_indices = @transform_5, window_bounds = array<i64: 2, 128>}]} {
    %c0 = arith.constant 0 : index
    %c0_0 = arith.constant 0 : index
    %0 = vector.load %arg1[%c0, %c0_0] : memref<2x32xf32, #tpu.memory_space<vmem>>, vector<2x32xf32>
    %c0_1 = arith.constant 0 : index
    %c0_2 = arith.constant 0 : index
    %1 = vector.load %arg2[%c0_1, %c0_2] : memref<32x128xf32, #tpu.memory_space<vmem>>, vector<32x128xf32>
    %cst = arith.constant dense<0.000000e+00> : vector<2x128xf32>
    %2 = tpu.matmul %0, %1, %cst {dimension_numbers = #tpu.dot_dimension_numbers<[1], [0], [0], [1], [0, 0, 1, 1], [], []>} : vector<2x32xf32>, vector<32x128xf32>, vector<2x128xf32> -> vector<2x128xf32>
    %c0_3 = arith.constant 0 : index
    %c0_4 = arith.constant 0 : index
    %3 = vector.load %arg3[%c0_3, %c0_4] : memref<1x128xf32, #tpu.memory_space<vmem>>, vector<1x128xf32>
    %4 = vector.broadcast %3 : vector<1x128xf32> to vector<2x128xf32>
    %5 = arith.addf %2, %4 : vector<2x128xf32>
    %cst_5 = arith.constant 0.000000e+00 : f32
    %6 = vector.broadcast %cst_5 : f32 to vector<2x128xf32>
    %7 = arith.maximumf %5, %6 : vector<2x128xf32>
    %c0_6 = arith.constant 0 : index
    %c0_7 = arith.constant 0 : index
    %8 = vector.load %arg4[%c0_6, %c0_7] : memref<128x128xf32, #tpu.memory_space<vmem>>, vector<128x128xf32>
    %cst_8 = arith.constant dense<0.000000e+00> : vector<2x128xf32>
    %9 = tpu.matmul %7, %8, %cst_8 {dimension_numbers = #tpu.dot_dimension_numbers<[1], [0], [0], [1], [0, 0, 1, 1], [], []>} : vector<2x128xf32>, vector<128x128xf32>, vector<2x128xf32> -> vector<2x128xf32>
    %c0_9 = arith.constant 0 : index
    %c0_10 = arith.constant 0 : index
    %10 = vector.load %arg5[%c0_9, %c0_10] : memref<1x128xf32, #tpu.memory_space<vmem>>, vector<1x128xf32>
    %11 = vector.broadcast %10 : vector<1x128xf32> to vector<2x128xf32>
    %12 = arith.addf %9, %11 : vector<2x128xf32>
    %c0_11 = arith.constant 0 : index
    %c0_12 = arith.constant 0 : index
    %13 = vector.load %arg6[%c0_11, %c0_12] : memref<2x128xf32, #tpu.memory_space<vmem>>, vector<2x128xf32>
    tpu.vector_store %arg6[%c0_11, %c0_12], %12 {strides = array<i32>} : memref<2x128xf32, #tpu.memory_space<vmem>>, vector<2x128xf32>,
    return
  }
  func.func @transform_0(%arg0: i32) -> (i32, i32) {
    %c0_i32 = arith.constant 0 : i32
    %c0_i32_0 = arith.constant 0 : i32
    return %arg0, %c0_i32 : i32, i32
  }
  func.func @transform_1(%arg0: i32) -> (i32, i32) {
    %c0_i32 = arith.constant 0 : i32
    %c0_i32_0 = arith.constant 0 : i32
    %c0_i32_1 = arith.constant 0 : i32
    return %c0_i32, %c0_i32_0 : i32, i32
  }
  func.func @transform_2(%arg0: i32) -> (i32, i32) {
    %c0_i32 = arith.constant 0 : i32
    %c0_i32_0 = arith.constant 0 : i32
    %c0_i32_1 = arith.constant 0 : i32
    return %c0_i32, %c0_i32_0 : i32, i32
  }
  func.func @transform_3(%arg0: i32) -> (i32, i32) {
    %c0_i32 = arith.constant 0 : i32
    %c0_i32_0 = arith.constant 0 : i32
    %c0_i32_1 = arith.constant 0 : i32
    return %c0_i32, %c0_i32_0 : i32, i32
  }
  func.func @transform_4(%arg0: i32) -> (i32, i32) {
    %c0_i32 = arith.constant 0 : i32
    %c0_i32_0 = arith.constant 0 : i32
    %c0_i32_1 = arith.constant 0 : i32
    return %c0_i32, %c0_i32_0 : i32, i32
  }
  func.func @transform_5(%arg0: i32) -> (i32, i32) {
    %c0_i32 = arith.constant 0 : i32
    %c0_i32_0 = arith.constant 0 : i32
    return %arg0, %c0_i32 : i32, i32
  }
}

</mosaic_0001>

<llo_original>
// kernel: classification_forward.1
$region0: #{classification_forward.1}
  #allocation0 [shape = 'u32[]', space=smem, size = 0x4, offset = 0x4, fixed_abs, tag = 'smem constant byte address 0x4 - core index']
  #allocation1 [shape = 'u32[144,128]{1,0:T(1,128)}', space=vmem, size = 0x12000, scoped, tag = 'internal scratch']
  %s0 = inlined_call_operand.vmem [shape: f32[2,32], index: 0, kind: input, shape index: {}]
  %s1 = inlined_call_operand.hbm [shape: f32[32,128], index: 1, kind: input, shape index: {}]
  %s2 = inlined_call_operand.vmem [shape: f32[1,128], index: 2, kind: input, shape index: {}]
  %s3 = inlined_call_operand.hbm [shape: f32[128,128], index: 3, kind: input, shape index: {}]
  %s4 = inlined_call_operand.vmem [shape: f32[1,128], index: 4, kind: input, shape index: {}]
  %s5 = inlined_call_operand.hbm [shape: f32[2,128], index: 5, kind: output, shape index: {}]
  %s6 = sld [smem:[#allocation0]]
  $region38: #{classification_forward.1} parent=0
    _
  %s8 = ssub.s32 1, %s6
  %s9 = scalar_select 0, %s8, %s6
  $region1: #{classification_forward.1} parent=0
    #allocation2 [shape = 'u8[16384]{0}', space=vmem, size = 0x4000, scoped, tag = 'input window, operand 1, single buffered']
    #allocation3 [shape = 's32[1]{0}', space=sflag, size = 0x4, scoped, tag = 'scoped memory for classification_forward.1']
    #allocation4 [shape = 's32[1]{0}', space=sflag, size = 0x4, scoped, tag = 'scoped memory for classification_forward.1']
    #allocation5 [shape = 'u8[65536]{0}', space=vmem, size = 0x10000, scoped, tag = 'input window, operand 3, single buffered']
    #allocation6 [shape = 's32[1]{0}', space=sflag, size = 0x4, scoped, tag = 'scoped memory for classification_forward.1']
    #allocation7 [shape = 'u8[1024]{0}', space=vmem, size = 0x400, scoped, tag = 'output window, operand 0, single buffered']
    %10 = vsyncpa [#allocation3], 0
    %11 = vsyncpa [#allocation6], 0
    %12 = vsyncpa [#allocation4], 0
    // Predicated region
    $region2: #{classification_forward.1} parent=1 // pred_check
      _
    $region3: #{classification_forward.1} parent=1 // pred_check_branch
      %14 = sbr.rel (0) target = $region5
    $region4: #{classification_forward.1} parent=1 // pred_region
      _
    $region5: #{classification_forward.1} parent=1 // pred_fallthru
      _
    // Predicated region
    $region6: #{classification_forward.1} parent=1 // pred_check
      _
    $region7: #{classification_forward.1} parent=1 // pred_check_branch
      %16 = sbr.rel (0) target = $region9
    $region8: #{classification_forward.1} parent=1 // pred_region
      %s18 = ssub.s32 512, 512
      %19 = vsyncadd [#allocation3], %s18
      %s20 = sshll.u32 [#allocation2], 4
      %s21 = int_to_ptr.vmem [resolvable:$true] %s20
      %26 = dma.hbm_to_vmem [thread:$0]  %s1, 512, %s21, [#allocation3], 128, 128, 8
    $region9: #{classification_forward.1} parent=1 // pred_fallthru
      _
    // Predicated region
    $region10: #{classification_forward.1} parent=1 // pred_check
      _
    $region11: #{classification_forward.1} parent=1 // pred_check_branch
      %28 = sbr.rel (0) target = $region13
    $region12: #{classification_forward.1} parent=1 // pred_region
      _
    $region13: #{classification_forward.1} parent=1 // pred_fallthru
      _
    // Predicated region
    $region14: #{classification_forward.1} parent=1 // pred_check
      _
    $region15: #{classification_forward.1} parent=1 // pred_check_branch
      %30 = sbr.rel (0) target = $region17
    $region16: #{classification_forward.1} parent=1 // pred_region
      %s32 = ssub.s32 2048, 2048
      %33 = vsyncadd [#allocation6], %s32
      %s34 = sshll.u32 [#allocation5], 4
      %s35 = int_to_ptr.vmem [resolvable:$true] %s34
      %40 = dma.hbm_to_vmem [thread:$0]  %s3, 2048, %s35, [#allocation6], 128, 128, 8
    $region17: #{classification_forward.1} parent=1 // pred_fallthru
      _
    // Predicated region
    $region18: #{classification_forward.1} parent=1 // pred_check
      _
    $region19: #{classification_forward.1} parent=1 // pred_check_branch
      %42 = sbr.rel (0) target = $region21
    $region20: #{classification_forward.1} parent=1 // pred_region
      _
    $region21: #{classification_forward.1} parent=1 // pred_fallthru
      _
    // Predicated region
    $region22: #{classification_forward.1} parent=1 // pred_check
      _
    $region23: #{classification_forward.1} parent=1 // pred_check_branch
      %44 = sbr.rel (0) target = $region25
    $region24: #{classification_forward.1} parent=1 // pred_region
      %45 = dma.done [#allocation3], 512
    $region25: #{classification_forward.1} parent=1 // pred_fallthru
      _
    // Predicated region
    $region26: #{classification_forward.1} parent=1 // pred_check
      _
    $region27: #{classification_forward.1} parent=1 // pred_check_branch
      %47 = sbr.rel (0) target = $region29
    $region28: #{classification_forward.1} parent=1 // pred_region
      %48 = dma.done [#allocation6], 2048
    $region29: #{classification_forward.1} parent=1 // pred_fallthru
      _
    %v49 = vld [vmem:[%s0] sm:$0x3]
    %v50 = vld [vmem:[#allocation2] sm:$0xff]
    %v51 = vld [vmem:[#allocation2 + $0x8] sm:$0xff]
    %v52 = vld [vmem:[#allocation2 + $0x10] sm:$0xff]
    %v53 = vld [vmem:[#allocation2 + $0x18] sm:$0xff]
    %v54 = vld [vmem:[%s2] sm:$0x1]
    %v56 = vlaneseq
    %v57 = vshrl.u32 %v56, 7
    %v58 = vsub.s32 0, %v57
    %v59 = vrot.slane %v54, %v58
    %vm61 = vcmask 261120
    %v63 = vsel %vm61, %v49, 0
    %65 = vmatprep.subr.mxu0 0.0
    %66 = vmatpush1.msra.mxu0 %v50
    %67 = vmatprep.subr.mxu0 0.0
    %68 = vmatpush1.msra.mxu0 %v51
    %69 = vmatprep.subr.mxu0 0.0
    %70 = vmatpush1.msra.mxu0 %v52
    %71 = vmatprep.subr.mxu0 0.0
    %72 = vmatpush1.msra.mxu0 %v53
    %73 = vmatprep.subr.mxu0 0.0
    %74 = vmatpush1.msra.mxu0 0.0
    %75 = vmatprep.subr.mxu0 0.0
    %76 = vmatpush1.msra.mxu0 0.0
    %77 = vmatprep.subr.mxu0 0.0
    %78 = vmatpush1.msra.mxu0 0.0
    %79 = vmatprep.subr.mxu0 0.0
    %80 = vmatpush1.msra.mxu0 0.0
    %81 = vmatprep.subr.mxu0 0.0
    %82 = vmatpush1.msra.mxu0 0.0
    %83 = vmatprep.subr.mxu0 0.0
    %84 = vmatpush1.msra.mxu0 0.0
    %85 = vmatprep.subr.mxu0 0.0
    %86 = vmatpush1.msra.mxu0 0.0
    %87 = vmatprep.subr.mxu0 0.0
    %88 = vmatpush1.msra.mxu0 0.0
    %89 = vmatprep.subr.mxu0 0.0
    %90 = vmatpush1.msra.mxu0 0.0
    %91 = vmatprep.subr.mxu0 0.0
    %92 = vmatpush1.msra.mxu0 0.0
    %93 = vmatprep.subr.mxu0 0.0
    %94 = vmatpush1.msra.mxu0 0.0
    %95 = vmatprep.subr.mxu0 0.0
    %96 = vmatpush1.msra.mxu0 0.0
    %97 = vmatprep.subr.mxu0 0.0
    %98 = vmatpush1.msra.mxu0 0.0
    %99 = vmatprep.subr.mxu0 0.0
    %100 = vmatpush1.msra.mxu0 0.0
    %101 = vmatprep.subr.mxu0 0.0
    %102 = vmatpush1.msra.mxu0 0.0
    %103 = vmatprep.subr.mxu0 0.0
    %104 = vmatpush1.msra.mxu0 0.0
    %105 = vmatprep.subr.mxu0 0.0
    %106 = vmatpush1.msra.mxu0 0.0
    %107 = vmatprep.subr.mxu0 0.0
    %108 = vmatpush1.msra.mxu0 0.0
    %109 = vmatprep.subr.mxu0 0.0
    %110 = vmatpush1.msra.mxu0 0.0
    %111 = vmatprep.subr.mxu0 0.0
    %112 = vmatpush1.msra.mxu0 0.0
    %113 = vmatprep.subr.mxu0 0.0
    %114 = vmatpush1.msra.mxu0 0.0
    %115 = vmatprep.subr.mxu0 0.0
    %116 = vmatpush1.msra.mxu0 0.0
    %117 = vmatprep.subr.mxu0 0.0
    %118 = vmatpush1.msra.mxu0 0.0
    %119 = vmatprep.subr.mxu0 0.0
    %120 = vmatpush1.msra.mxu0 0.0
    %121 = vmatprep.subr.mxu0 0.0
    %122 = vmatpush1.msra.mxu0 0.0
    %123 = vmatprep.subr.mxu0 0.0
    %124 = vmatpush1.msra.mxu0 0.0
    %125 = vmatprep.subr.mxu0 0.0
    %126 = vmatpush1.msra.mxu0 0.0
    %127 = vmatprep.subr.mxu0 0.0
    %128 = vmatpush1.msra.mxu0 0.0
    %129 = vmatprep.mubr.f32.mxu0 0.0
    %130 = vmatmul.mubr.f32.gmra.mrb[0].mxu0 %v63
    %v131 = vpop.f32.mrb[0].mxu0
    %v132 = vadd.f32 %v59, %v131
    %v133 = vpop.f32.mrb[0].mxu0
    %134 = vdwg.mxu0
    %v135 = vmax.f32 %v132, 0.0
    %v136 = vld [vmem:[#allocation5] sm:$0xff]
    %v137 = vld [vmem:[#allocation5 + $0x8] sm:$0xff]
    %v138 = vld [vmem:[#allocation5 + $0x10] sm:$0xff]
    %v139 = vld [vmem:[#allocation5 + $0x18] sm:$0xff]
    %v140 = vld [vmem:[#allocation5 + $0x20] sm:$0xff]
    %v141 = vld [vmem:[#allocation5 + $0x28] sm:$0xff]
    %v142 = vld [vmem:[#allocation5 + $0x30] sm:$0xff]
    %v143 = vld [vmem:[#allocation5 + $0x38] sm:$0xff]
    %v144 = vld [vmem:[#allocation5 + $0x40] sm:$0xff]
    %v145 = vld [vmem:[#allocation5 + $0x48] sm:$0xff]
    %v146 = vld [vmem:[#allocation5 + $0x50] sm:$0xff]
    %v147 = vld [vmem:[#allocation5 + $0x58] sm:$0xff]
    %v148 = vld [vmem:[#allocation5 + $0x60] sm:$0xff]
    %v149 = vld [vmem:[#allocation5 + $0x68] sm:$0xff]
    %v150 = vld [vmem:[#allocation5 + $0x70] sm:$0xff]
    %v151 = vld [vmem:[#allocation5 + $0x78] sm:$0xff]
    %v152 = vld [vmem:[%s4] sm:$0x1]
    %v154 = vlaneseq
    %v155 = vshrl.u32 %v154, 7
    %v156 = vsub.s32 0, %v155
    %v157 = vrot.slane %v152, %v156
    %159 = vmatprep.subr.mxu0 0.0
    %160 = vmatpush1.msra.mxu0 %v136
    %161 = vmatprep.subr.mxu0 0.0
    %162 = vmatpush1.msra.mxu0 %v137
    %163 = vmatprep.subr.mxu0 0.0
    %164 = vmatpush1.msra.mxu0 %v138
    %165 = vmatprep.subr.mxu0 0.0
    %166 = vmatpush1.msra.mxu0 %v139
    %167 = vmatprep.subr.mxu0 0.0
    %168 = vmatpush1.msra.mxu0 %v140
    %169 = vmatprep.subr.mxu0 0.0
    %170 = vmatpush1.msra.mxu0 %v141
    %171 = vmatprep.subr.mxu0 0.0
    %172 = vmatpush1.msra.mxu0 %v142
    %173 = vmatprep.subr.mxu0 0.0
    %174 = vmatpush1.msra.mxu0 %v143
    %175 = vmatprep.subr.mxu0 0.0
    %176 = vmatpush1.msra.mxu0 %v144
    %177 = vmatprep.subr.mxu0 0.0
    %178 = vmatpush1.msra.mxu0 %v145
    %179 = vmatprep.subr.mxu0 0.0
    %180 = vmatpush1.msra.mxu0 %v146
    %181 = vmatprep.subr.mxu0 0.0
    %182 = vmatpush1.msra.mxu0 %v147
    %183 = vmatprep.subr.mxu0 0.0
    %184 = vmatpush1.msra.mxu0 %v148
    %185 = vmatprep.subr.mxu0 0.0
    %186 = vmatpush1.msra.mxu0 %v149
    %187 = vmatprep.subr.mxu0 0.0
    %188 = vmatpush1.msra.mxu0 %v150
    %189 = vmatprep.subr.mxu0 0.0
    %190 = vmatpush1.msra.mxu0 %v151
    %191 = vmatprep.subr.mxu0 0.0
    %192 = vmatpush1.msra.mxu0 0.0
    %193 = vmatprep.subr.mxu0 0.0
    %194 = vmatpush1.msra.mxu0 0.0
    %195 = vmatprep.subr.mxu0 0.0
    %196 = vmatpush1.msra.mxu0 0.0
    %197 = vmatprep.subr.mxu0 0.0
    %198 = vmatpush1.msra.mxu0 0.0
    %199 = vmatprep.subr.mxu0 0.0
    %200 = vmatpush1.msra.mxu0 0.0
    %201 = vmatprep.subr.mxu0 0.0
    %202 = vmatpush1.msra.mxu0 0.0
    %203 = vmatprep.subr.mxu0 0.0
    %204 = vmatpush1.msra.mxu0 0.0
    %205 = vmatprep.subr.mxu0 0.0
    %206 = vmatpush1.msra.mxu0 0.0
    %207 = vmatprep.subr.mxu0 0.0
    %208 = vmatpush1.msra.mxu0 0.0
    %209 = vmatprep.subr.mxu0 0.0
    %210 = vmatpush1.msra.mxu0 0.0
    %211 = vmatprep.subr.mxu0 0.0
    %212 = vmatpush1.msra.mxu0 0.0
    %213 = vmatprep.subr.mxu0 0.0
    %214 = vmatpush1.msra.mxu0 0.0
    %215 = vmatprep.subr.mxu0 0.0
    %216 = vmatpush1.msra.mxu0 0.0
    %217 = vmatprep.subr.mxu0 0.0
    %218 = vmatpush1.msra.mxu0 0.0
    %219 = vmatprep.subr.mxu0 0.0
    %220 = vmatpush1.msra.mxu0 0.0
    %221 = vmatprep.subr.mxu0 0.0
    %222 = vmatpush1.msra.mxu0 0.0
    %223 = vmatprep.mubr.f32.mxu0 0.0
    %224 = vmatmul.mubr.f32.gmra.mrb[0].mxu0 %v135
    %v225 = vpop.f32.mrb[0].mxu0
    %v226 = vadd.f32 %v157, %v225
    %v227 = vpop.f32.mrb[0].mxu0
    %228 = vdwg.mxu0
    %229 = vst [vmem:[#allocation7] sm:$0x3] %v226
    // Predicated region
    $region30: #{classification_forward.1} parent=1 // pred_check
      _
    $region31: #{classification_forward.1} parent=1 // pred_check_branch
      %231 = sbr.rel (0) target = $region33
    $region32: #{classification_forward.1} parent=1 // pred_region
      %s233 = ssub.s32 32, 32
      %234 = vsyncadd [#allocation4], %s233
      %s236 = sshll.u32 [#allocation7], 4
      %s237 = int_to_ptr.vmem [resolvable:$true] %s236
      %239 = dma.vmem_to_hbm [thread:$0]  %s237, 32, %s5, [#allocation4]
    $region33: #{classification_forward.1} parent=1 // pred_fallthru
      _
    // Predicated region
    $region34: #{classification_forward.1} parent=1 // pred_check
      _
    $region35: #{classification_forward.1} parent=1 // pred_check_branch
      %241 = sbr.rel (0) target = $region37
    $region36: #{classification_forward.1} parent=1 // pred_region
      %242 = dma.done [#allocation4], 32
    $region37: #{classification_forward.1} parent=1 // pred_fallthru
      _
    %243 = vsyncpa [#allocation3], 1
    %244 = vsyncpa [#allocation6], 1
    %245 = vsyncpa [#allocation4], 1

</llo_original>
